<compile_context>
chip_gen: v7x
topology: tpu7x:2x2x1
jax: 0.10.0
libtpu: 0.0.40
codegen_flags: <defaults>
</compile_context>

<pallas_src>
import functools
import jax
import jax.numpy as jnp
from jax.experimental import pallas as pl
from jax.experimental.pallas import tpu as pltpu

_MiB = 1024 * 1024


def _layernorm(x, gamma, beta, eps=1e-5):
    # x: (R, C) f32, gamma/beta: (1, C) f32
    mean = jnp.mean(x, axis=-1, keepdims=True)
    var = jnp.mean((x - mean) ** 2, axis=-1, keepdims=True)
    return (x - mean) * jax.lax.rsqrt(var + eps) * gamma + beta


# --------------------------------------------------------------------------
# phase 1: LN1 + fused QKV projection (row tile of the sequence)
# --------------------------------------------------------------------------
def ln_qkv_kernel(x_ref, g1_ref, b1_ref, wqkv_ref, qkv_ref, *, compute_dtype):
    x = x_ref[...].astype(jnp.float32)                              # (TQ, C)
    h = _layernorm(x, g1_ref[...], b1_ref[...]).astype(compute_dtype)
    qkv_ref[...] = jnp.dot(
        h, wqkv_ref[...], preferred_element_type=jnp.float32
    ).astype(qkv_ref.dtype)                                         # (TQ, 3C) bf16


# --------------------------------------------------------------------------
# phase 2: attention (head-chunked) + proj + residual + LN2 + MLP + residual
# --------------------------------------------------------------------------
def attn_mlp_kernel(x_ref, q_ref, k_ref, v_ref,
                    wproj_ref, bproj_ref,
                    g2_ref, b2_ref,
                    w1_ref, bb1_ref,
                    w2_ref, bb2_ref,
                    o_ref, *, head_chunk, compute_dtype):
    tq, C = x_ref.shape
    num_heads = q_ref.shape[0]

    q_all = q_ref[...]            # (H, TQ, hd)  bf16
    k_all = k_ref[...]            # (H, hd, N)   bf16 (lane dim = N, no padding)
    v_all = v_ref[...]            # (H, N,  hd)  bf16
    wp_all = wproj_ref[...]       # (H, hd, C)   bf16

    # --- attention, head-chunked to bound the f32 (G, TQ, N) softmax slab ---
    proj = jnp.zeros((tq, C), jnp.float32)
    for h0 in range(0, num_heads, head_chunk):
        h1 = min(h0 + head_chunk, num_heads)
        qg = q_all[h0:h1]                                           # (G, TQ, hd)
        kg = k_all[h0:h1]                                           # (G, hd, N)
        vg = v_all[h0:h1]                                           # (G, N,  hd)
        wg = wp_all[h0:h1]                                          # (G, hd, C)

        # scale already folded into Q weight columns on the host
        s = jnp.einsum('gqd,gdk->gqk', qg, kg,
                       preferred_element_type=jnp.float32)          # (G, TQ, N) f32
        m = jnp.max(s, axis=-1, keepdims=True)
        p = jnp.exp(s - m)                                          # f32 (safe on v5e)
        denom = jnp.sum(p, axis=-1, keepdims=True)                  # (G, TQ, 1)
        og = jnp.einsum('gqk,gkd->gqd', p.astype(compute_dtype), vg,
                        preferred_element_type=jnp.float32)         # (G, TQ, hd) f32
        og = og * pl.reciprocal(denom, approx=True)                 # EUP reciprocal

        # head merge + output projection: batched MXU matmul per chunk, then a
        # small reduce over the chunk axis — no head-axis transpose/concat.
        pc = jnp.einsum('gqd,gdc->gqc', og.astype(compute_dtype), wg,
                        preferred_element_type=jnp.float32)         # (G, TQ, C)
        proj = proj + jnp.sum(pc, axis=0)

    attn_out = proj + bproj_ref[...]

    x_rows = x_ref[...].astype(jnp.float32)                         # (TQ, C)
    x1 = x_rows + attn_out                                          # residual 1

    # --- LN2 + MLP on this row tile ---
    h2 = _layernorm(x1, g2_ref[...], b2_ref[...]).astype(compute_dtype)
    z = jnp.dot(h2, w1_ref[...], preferred_element_type=jnp.float32) + bb1_ref[...]
    z = jax.nn.gelu(z, approximate=False)                           # erf GELU (matches torch)
    y = jnp.dot(z.astype(compute_dtype), w2_ref[...],
                preferred_element_type=jnp.float32) + bb2_ref[...]
    o_ref[...] = (x1 + y).astype(o_ref.dtype)                       # residual 2


# --------------------------------------------------------------------------
# generation-aware VMEM budget / tile selection
# --------------------------------------------------------------------------
def _vmem_budget():
    cap = None
    try:
        cap = getattr(pltpu.get_tpu_info(), "vmem_capacity_bytes", None)
    except Exception:
        cap = None
    if not cap:
        cap = 64 * _MiB  # conservative default (v7x per-TensorCore VMEM)
    # leave headroom: ~85% on 128 MiB generations (v5e/v6e), ~75% on 64 MiB (v7x)
    frac = 0.85 if cap >= 96 * _MiB else 0.75
    return int(cap * frac), int(cap)


def _attn_vmem_estimate(N, C, Hm, H, hd, tq, g, wbuf=1):
    f32, b16 = 4, 2
    w = wbuf * (b16 * (H * hd * C + C * Hm + Hm * C) + f32 * (4 * C + Hm))
    io = 2 * (tq * C * f32 + H * tq * hd * b16 + tq * C * f32)      # x / q / out (dbl-buf)
    kv = 2 * 2 * (H * hd * N * b16)                                 # K + V full (dbl-buf)
    inter = f32 * (2 * g * tq * N + 2 * g * tq * hd + g * tq * C
                   + 6 * tq * C + 2 * tq * Hm)
    return int(1.15 * (w + io + kv + inter))


def _pick_tiles(N, C, Hm, H, hd, budget, cap):
    tq_cands = [t for t in ((512, 256, 128) if cap >= 96 * _MiB else (256, 128))
                if t <= N and N % t == 0]
    if not tq_cands:
        tq_cands = [N]  # TODO(synk): pad/ragged-tile support for N not divisible by 128
    g_cands = sorted({g for g in (H, 8, 4, 2, 1) if g <= H}, reverse=True)
    for tq in tq_cands:                      # prefer the largest row tile,
        for g in g_cands:                    # then the largest head chunk that fits
            if _attn_vmem_estimate(N, C, Hm, H, hd, tq, g) <= budget:
                return tq, g
    return tq_cands[-1], 1


# --------------------------------------------------------------------------
# host wrapper
# --------------------------------------------------------------------------
def block_forward(x, params, num_heads, *, q_tile=None, head_chunk=None,
                  compute_dtype=jnp.bfloat16):
    B, N, C = x.shape
    assert C % num_heads == 0
    Hm = params["w1"].shape[1]
    hd = C // num_heads
    scale = hd ** (-0.5)

    budget, cap = _vmem_budget()
    auto_tq, auto_g = _pick_tiles(N, C, Hm, num_heads, hd, budget, cap)
    if q_tile is None:
        q_tile = auto_tq
    if head_chunk is None:
        head_chunk = auto_g
    assert N % q_tile == 0
    n_q = N // q_tile

    # Fold the attention scale into the Q-projection columns (exact rewrite)
    # and cast matmul weights to bf16 (f32 accumulation inside the kernels).
    wqkv = jnp.concatenate(
        [params["wqkv"][:, :C] * scale, params["wqkv"][:, C:]], axis=1
    ).astype(compute_dtype)
    wproj_h = params["wproj"].reshape(num_heads, hd, C).astype(compute_dtype)
    w1 = params["w1"].astype(compute_dtype)
    w2 = params["w2"].astype(compute_dtype)

    def run(single_buffer_weights):
        def const_spec(shape):
            n = len(shape)
            idx = lambda b, j, _n=n: (0,) * _n
            if single_buffer_weights:
                # constant index_map => single-buffer (don't waste VMEM on a
                # second buffer that is never used)
                return pl.BlockSpec(shape, idx, pipeline_mode=pl.Buffered(1))
            return pl.BlockSpec(shape, idx)

        row_spec = pl.BlockSpec((None, q_tile, C), lambda b, j: (b, j, 0))

        # -------- phase 1: LN1 + fused QKV projection (row tiled) --------
        qkv = pl.pallas_call(
            functools.partial(ln_qkv_kernel, compute_dtype=compute_dtype),
            out_shape=jax.ShapeDtypeStruct((B, N, 3 * C), compute_dtype),
            grid_spec=pltpu.PrefetchScalarGridSpec(
                num_scalar_prefetch=0,
                grid=(B, n_q),
                in_specs=[
                    row_spec,                       # x row tile
                    const_spec((1, C)),             # ln1 gamma
                    const_spec((1, C)),             # ln1 beta
                    const_spec((C, 3 * C)),         # qkv weight (scale folded, bf16)
                ],
                out_specs=pl.BlockSpec((None, q_tile, 3 * C),
                                       lambda b, j: (b, j, 0)),
            ),
            compiler_params=pltpu.CompilerParams(
                dimension_semantics=("parallel", "parallel"),
                vmem_limit_bytes=budget),
        )(x, params["g1"], params["b1"], wqkv)

        # head-major Q/K/V (cheap XLA reshape/transpose of bf16 data in HBM);
        # K laid out (B, H, hd, N) so its lane dim is N (no hd<128 lane padding).
        qkv5 = qkv.reshape(B, N, 3, num_heads, hd)
        q = qkv5[:, :, 0].transpose(0, 2, 1, 3)      # (B, H, N,  hd)
        k = qkv5[:, :, 1].transpose(0, 2, 3, 1)      # (B, H, hd, N)
        v = qkv5[:, :, 2].transpose(0, 2, 1, 3)      # (B, H, N,  hd)

        # -------- phase 2: attention + proj + residual + LN2 + MLP --------
        return pl.pallas_call(
            functools.partial(attn_mlp_kernel, head_chunk=head_chunk,
                              compute_dtype=compute_dtype),
            out_shape=jax.ShapeDtypeStruct((B, N, C), x.dtype),
            grid_spec=pltpu.PrefetchScalarGridSpec(
                num_scalar_prefetch=0,
                grid=(B, n_q),
                in_specs=[
                    row_spec,                                           # x row tile
                    pl.BlockSpec((None, num_heads, q_tile, hd),
                                 lambda b, j: (b, 0, j, 0)),            # Q row tile
                    pl.BlockSpec((None, num_heads, hd, N),
                                 lambda b, j: (b, 0, 0, 0)),            # K full
                    pl.BlockSpec((None, num_heads, N, hd),
                                 lambda b, j: (b, 0, 0, 0)),            # V full
                    const_spec((num_heads, hd, C)),                     # proj W (per head)
                    const_spec((1, C)),                                 # proj bias
                    const_spec((1, C)), const_spec((1, C)),             # ln2 gamma / beta
                    const_spec((C, Hm)), const_spec((1, Hm)),           # fc1 W / b
                    const_spec((Hm, C)), const_spec((1, C)),            # fc2 W / b
                ],
                out_specs=row_spec,
            ),
            compiler_params=pltpu.CompilerParams(
                dimension_semantics=("parallel", "parallel"),
                vmem_limit_bytes=budget),
        )(x, q, k, v,
          wproj_h, params["bproj"],
          params["g2"], params["b2"],
          w1, params["bb1"],
          w2, params["bb2"])

    try:
        return run(single_buffer_weights=True)
    except Exception:
        # Fallback in case this JAX build rejects pl.Buffered(1) single-buffering.
        return run(single_buffer_weights=False)


# --------------------------------------------------------------------------
# parameters / pure-JAX reference / self-test
# --------------------------------------------------------------------------
def make_params(key, dim, num_heads, mlp_ratio=4.0):
    H = int(dim * mlp_ratio)
    ks = jax.random.split(key, 4)
    std = 0.02
    return {
        "g1": jnp.ones((1, dim), jnp.float32),
        "b1": jnp.zeros((1, dim), jnp.float32),
        # weights stored as (in, out) so the kernels do x @ W + b
        "wqkv": std * jax.random.normal(ks[0], (dim, 3 * dim), jnp.float32),
        "wproj": std * jax.random.normal(ks[1], (dim, dim), jnp.float32),
        "bproj": jnp.zeros((1, dim), jnp.float32),
        "g2": jnp.ones((1, dim), jnp.float32),
        "b2": jnp.zeros((1, dim), jnp.float32),
        "w1": std * jax.random.normal(ks[2], (dim, H), jnp.float32),
        "bb1": jnp.zeros((1, H), jnp.float32),
        "w2": std * jax.random.normal(ks[3], (H, dim), jnp.float32),
        "bb2": jnp.zeros((1, dim), jnp.float32),
    }


def block_reference(x, p, num_heads):
    """Pure-JAX f32 reference mirroring the PyTorch forward exactly."""
    B, N, C = x.shape
    hd = C // num_heads
    scale = hd ** (-0.5)

    def ln(v, g, b, eps=1e-5):
        m = v.mean(-1, keepdims=True)
        va = ((v - m) ** 2).mean(-1, keepdims=True)
        return (v - m) / jnp.sqrt(va + eps) * g + b

    h = ln(x, p["g1"], p["b1"])
    qkv = h @ p["wqkv"]                                     # (B, N, 3C)
    qkv = qkv.reshape(B, N, 3, num_heads, hd).transpose(2, 0, 3, 1, 4)
    q, k, v = qkv[0], qkv[1], qkv[2]                        # (B, H, N, hd)
    attn = jnp.einsum("bhnd,bhmd->bhnm", q, k) * scale
    attn = jax.nn.softmax(attn, axis=-1)
    o = jnp.einsum("bhnm,bhmd->bhnd", attn, v)
    o = o.transpose(0, 2, 1, 3).reshape(B, N, C)
    x = x + (o @ p["wproj"] + p["bproj"])
    h2 = ln(x, p["g2"], p["b2"])
    z = jax.nn.gelu(h2 @ p["w1"] + p["bb1"], approximate=False)
    x = x + (z @ p["w2"] + p["bb2"])
    return x


if __name__ == "__main__":
    def check(B, N, C, num_heads, key):
        kx, kp = jax.random.split(key)
        x = jax.random.normal(kx, (B, N, C), jnp.float32)
        params = make_params(kp, C, num_heads)
        out = jax.block_until_ready(block_forward(x, params, num_heads))
        ref = block_reference(x, params, num_heads)
        assert out.shape == (B, N, C)
        err = float(jnp.max(jnp.abs(out - ref)))
        # bf16 matmul operands (f32 accumulation) => modest tolerance vs f32 ref
        assert jnp.allclose(out, ref, atol=2e-2, rtol=2e-2), (
            f"mismatch (B={B}, N={N}, C={C}, heads={num_heads}), "
            f"max abs err = {err:e}")

    key = jax.random.PRNGKey(0)
    k1, k2 = jax.random.split(key)
    check(2, 8, 32, 4, k1)        # tiny smoke test
    check(1, 256, 128, 4, k2)     # exercises (8,128) tiling + multi-tile grid
    print("KERNEL_OK")
</pallas_src>

<mosaic_0001>
module attributes {stable_mosaic.version = 11 : i64} {
  func.func @ln_qkv_kernel(%arg0: i32, %arg1: i32, %arg2: memref<1x8x32xf32, #tpu.memory_space<vmem>>, %arg3: memref<1x32xf32, #tpu.memory_space<vmem>>, %arg4: memref<1x32xf32, #tpu.memory_space<vmem>>, %arg5: memref<32x96xbf16, #tpu.memory_space<vmem>>, %arg6: memref<1x8x96xbf16, #tpu.memory_space<vmem>>) attributes {dimension_semantics = [#tpu.dimension_semantics<parallel>, #tpu.dimension_semantics<parallel>], iteration_bounds = array<i64: 2, 1>, scalar_prefetch = 0 : i64, scratch_operands = 0 : i64, tpu.core_type = #tpu.core_type<tc>, window_params = [{transform_indices = @transform_0, window_bounds = array<i64: 1, 8, 32>}, {pipeline_mode = #tpu.pipeline_mode<synchronous>, transform_indices = @transform_1, window_bounds = array<i64: 1, 32>}, {pipeline_mode = #tpu.pipeline_mode<synchronous>, transform_indices = @transform_2, window_bounds = array<i64: 1, 32>}, {pipeline_mode = #tpu.pipeline_mode<synchronous>, transform_indices = @transform_3, window_bounds = array<i64: 32, 96>}, {transform_indices = @transform_4, window_bounds = array<i64: 1, 8, 96>}]} {
    %c0 = arith.constant 0 : index
    %c0_0 = arith.constant 0 : index
    %c0_1 = arith.constant 0 : index
    %0 = vector.load %arg2[%c0, %c0_0, %c0_1] : memref<1x8x32xf32, #tpu.memory_space<vmem>>, vector<1x8x32xf32>
    %1 = vector.shape_cast %0 : vector<1x8x32xf32> to vector<8x32xf32>
    %c0_2 = arith.constant 0 : index
    %c0_3 = arith.constant 0 : index
    %2 = vector.load %arg3[%c0_2, %c0_3] : memref<1x32xf32, #tpu.memory_space<vmem>>, vector<1x32xf32>
    %c0_4 = arith.constant 0 : index
    %c0_5 = arith.constant 0 : index
    %3 = vector.load %arg4[%c0_4, %c0_5] : memref<1x32xf32, #tpu.memory_space<vmem>>, vector<1x32xf32>
    %cst = arith.constant dense<0.000000e+00> : vector<8xf32>
    %4 = vector.multi_reduction <add>, %1, %cst [1] : vector<8x32xf32> to vector<8xf32>
    %5 = vector.shape_cast %4 : vector<8xf32> to vector<8x1xf32>
    %cst_6 = arith.constant 3.200000e+01 : f32
    %6 = vector.broadcast %cst_6 : f32 to vector<8x1xf32>
    %7 = arith.divf %5, %6 : vector<8x1xf32>
    %8 = vector.broadcast %7 : vector<8x1xf32> to vector<8x32xf32>
    %9 = arith.subf %1, %8 : vector<8x32xf32>
    %10 = arith.mulf %9, %9 : vector<8x32xf32>
    %cst_7 = arith.constant dense<0.000000e+00> : vector<8xf32>
    %11 = vector.multi_reduction <add>, %10, %cst_7 [1] : vector<8x32xf32> to vector<8xf32>
    %12 = vector.shape_cast %11 : vector<8xf32> to vector<8x1xf32>
    %cst_8 = arith.constant 3.200000e+01 : f32
    %13 = vector.broadcast %cst_8 : f32 to vector<8x1xf32>
    %14 = arith.divf %12, %13 : vector<8x1xf32>
    %15 = vector.broadcast %7 : vector<8x1xf32> to vector<8x32xf32>
    %16 = arith.subf %1, %15 : vector<8x32xf32>
    %cst_9 = arith.constant 9.99999974E-6 : f32
    %17 = vector.broadcast %cst_9 : f32 to vector<8x1xf32>
    %18 = arith.addf %14, %17 : vector<8x1xf32>
    %19 = math.rsqrt %18 : vector<8x1xf32>
    %20 = vector.broadcast %19 : vector<8x1xf32> to vector<8x32xf32>
    %21 = arith.mulf %16, %20 : vector<8x32xf32>
    %22 = vector.broadcast %2 : vector<1x32xf32> to vector<8x32xf32>
    %23 = arith.mulf %21, %22 : vector<8x32xf32>
    %24 = vector.broadcast %3 : vector<1x32xf32> to vector<8x32xf32>
    %25 = arith.addf %23, %24 : vector<8x32xf32>
    %26 = arith.truncf %25 : vector<8x32xf32> to vector<8x32xbf16>
    %c0_10 = arith.constant 0 : index
    %c0_11 = arith.constant 0 : index
    %27 = vector.load %arg5[%c0_10, %c0_11] : memref<32x96xbf16, #tpu.memory_space<vmem>>, vector<32x96xbf16>
    %cst_12 = arith.constant dense<0.000000e+00> : vector<8x96xf32>
    %28 = tpu.matmul %26, %27, %cst_12 {dimension_numbers = #tpu.dot_dimension_numbers<[1], [0], [0], [1], [0, 0, 1, 1], [], []>} : vector<8x32xbf16>, vector<32x96xbf16>, vector<8x96xf32> -> vector<8x96xf32>
    %29 = arith.truncf %28 : vector<8x96xf32> to vector<8x96xbf16>
    %c0_13 = arith.constant 0 : index
    %c0_14 = arith.constant 0 : index
    %c0_15 = arith.constant 0 : index
    %30 = vector.load %arg6[%c0_13, %c0_14, %c0_15] : memref<1x8x96xbf16, #tpu.memory_space<vmem>>, vector<1x8x96xbf16>
    %31 = vector.shape_cast %30 : vector<1x8x96xbf16> to vector<8x96xbf16>
    %32 = vector.shape_cast %29 : vector<8x96xbf16> to vector<1x8x96xbf16>
    tpu.vector_store %arg6[%c0_13, %c0_14, %c0_15], %32 {strides = array<i32>} : memref<1x8x96xbf16, #tpu.memory_space<vmem>>, vector<1x8x96xbf16>,
    return
  }
  func.func @transform_0(%arg0: i32, %arg1: i32) -> (i32, i32, i32) {
    %c0_i32 = arith.constant 0 : i32
    %c0_i32_0 = arith.constant 0 : i32
    return %arg0, %arg1, %c0_i32 : i32, i32, i32
  }
  func.func @transform_1(%arg0: i32, %arg1: i32) -> (i32, i32) {
    %c0_i32 = arith.constant 0 : i32
    %c0_i32_0 = arith.constant 0 : i32
    %c0_i32_1 = arith.constant 0 : i32
    return %c0_i32, %c0_i32_0 : i32, i32
  }
  func.func @transform_2(%arg0: i32, %arg1: i32) -> (i32, i32) {
    %c0_i32 = arith.constant 0 : i32
    %c0_i32_0 = arith.constant 0 : i32
    %c0_i32_1 = arith.constant 0 : i32
    return %c0_i32, %c0_i32_0 : i32, i32
  }
  func.func @transform_3(%arg0: i32, %arg1: i32) -> (i32, i32) {
    %c0_i32 = arith.constant 0 : i32
    %c0_i32_0 = arith.constant 0 : i32
    %c0_i32_1 = arith.constant 0 : i32
    return %c0_i32, %c0_i32_0 : i32, i32
  }
  func.func @transform_4(%arg0: i32, %arg1: i32) -> (i32, i32, i32) {
    %c0_i32 = arith.constant 0 : i32
    %c0_i32_0 = arith.constant 0 : i32
    return %arg0, %arg1, %c0_i32 : i32, i32, i32
  }
}

module attributes {stable_mosaic.version = 11 : i64} {
  func.func @ln_qkv_kernel(%arg0: i32, %arg1: i32, %arg2: memref<1x8x32xf32, #tpu.memory_space<vmem>>, %arg3: memref<1x32xf32, #tpu.memory_space<vmem>>, %arg4: memref<1x32xf32, #tpu.memory_space<vmem>>, %arg5: memref<32x96xbf16, #tpu.memory_space<vmem>>, %arg6: memref<1x8x96xbf16, #tpu.memory_space<vmem>>) attributes {dimension_semantics = [#tpu.dimension_semantics<parallel>, #tpu.dimension_semantics<parallel>], iteration_bounds = array<i64: 2, 1>, scalar_prefetch = 0 : i64, scratch_operands = 0 : i64, tpu.core_type = #tpu.core_type<tc>, window_params = [{transform_indices = @transform_0, window_bounds = array<i64: 1, 8, 32>}, {pipeline_mode = #tpu.pipeline_mode<synchronous>, transform_indices = @transform_1, window_bounds = array<i64: 1, 32>}, {pipeline_mode = #tpu.pipeline_mode<synchronous>, transform_indices = @transform_2, window_bounds = array<i64: 1, 32>}, {pipeline_mode = #tpu.pipeline_mode<synchronous>, transform_indices = @transform_3, window_bounds = array<i64: 32, 96>}, {transform_indices = @transform_4, window_bounds = array<i64: 1, 8, 96>}]} {
    %c0 = arith.constant 0 : index
    %c0_0 = arith.constant 0 : index
    %c0_1 = arith.constant 0 : index
    %0 = vector.load %arg2[%c0, %c0_0, %c0_1] : memref<1x8x32xf32, #tpu.memory_space<vmem>>, vector<1x8x32xf32>
    %1 = vector.shape_cast %0 : vector<1x8x32xf32> to vector<8x32xf32>
    %c0_2 = arith.constant 0 : index
    %c0_3 = arith.constant 0 : index
    %2 = vector.load %arg3[%c0_2, %c0_3] : memref<1x32xf32, #tpu.memory_space<vmem>>, vector<1x32xf32>
    %c0_4 = arith.constant 0 : index
    %c0_5 = arith.constant 0 : index
    %3 = vector.load %arg4[%c0_4, %c0_5] : memref<1x32xf32, #tpu.memory_space<vmem>>, vector<1x32xf32>
    %cst = arith.constant dense<0.000000e+00> : vector<8xf32>
    %4 = vector.multi_reduction <add>, %1, %cst [1] : vector<8x32xf32> to vector<8xf32>
    %5 = vector.shape_cast %4 : vector<8xf32> to vector<8x1xf32>
    %cst_6 = arith.constant 3.200000e+01 : f32
    %6 = vector.broadcast %cst_6 : f32 to vector<8x1xf32>
    %7 = arith.divf %5, %6 : vector<8x1xf32>
    %8 = vector.broadcast %7 : vector<8x1xf32> to vector<8x32xf32>
    %9 = arith.subf %1, %8 : vector<8x32xf32>
    %10 = arith.mulf %9, %9 : vector<8x32xf32>
    %cst_7 = arith.constant dense<0.000000e+00> : vector<8xf32>
    %11 = vector.multi_reduction <add>, %10, %cst_7 [1] : vector<8x32xf32> to vector<8xf32>
    %12 = vector.shape_cast %11 : vector<8xf32> to vector<8x1xf32>
    %cst_8 = arith.constant 3.200000e+01 : f32
    %13 = vector.broadcast %cst_8 : f32 to vector<8x1xf32>
    %14 = arith.divf %12, %13 : vector<8x1xf32>
    %15 = vector.broadcast %7 : vector<8x1xf32> to vector<8x32xf32>
    %16 = arith.subf %1, %15 : vector<8x32xf32>
    %cst_9 = arith.constant 9.99999974E-6 : f32
    %17 = vector.broadcast %cst_9 : f32 to vector<8x1xf32>
    %18 = arith.addf %14, %17 : vector<8x1xf32>
    %19 = math.rsqrt %18 : vector<8x1xf32>
    %20 = vector.broadcast %19 : vector<8x1xf32> to vector<8x32xf32>
    %21 = arith.mulf %16, %20 : vector<8x32xf32>
    %22 = vector.broadcast %2 : vector<1x32xf32> to vector<8x32xf32>
    %23 = arith.mulf %21, %22 : vector<8x32xf32>
    %24 = vector.broadcast %3 : vector<1x32xf32> to vector<8x32xf32>
    %25 = arith.addf %23, %24 : vector<8x32xf32>
    %26 = arith.truncf %25 : vector<8x32xf32> to vector<8x32xbf16>
    %c0_10 = arith.constant 0 : index
    %c0_11 = arith.constant 0 : index
    %27 = vector.load %arg5[%c0_10, %c0_11] : memref<32x96xbf16, #tpu.memory_space<vmem>>, vector<32x96xbf16>
    %cst_12 = arith.constant dense<0.000000e+00> : vector<8x96xf32>
    %28 = tpu.matmul %26, %27, %cst_12 {dimension_numbers = #tpu.dot_dimension_numbers<[1], [0], [0], [1], [0, 0, 1, 1], [], []>} : vector<8x32xbf16>, vector<32x96xbf16>, vector<8x96xf32> -> vector<8x96xf32>
    %29 = arith.truncf %28 : vector<8x96xf32> to vector<8x96xbf16>
    %c0_13 = arith.constant 0 : index
    %c0_14 = arith.constant 0 : index
    %c0_15 = arith.constant 0 : index
    %30 = vector.load %arg6[%c0_13, %c0_14, %c0_15] : memref<1x8x96xbf16, #tpu.memory_space<vmem>>, vector<1x8x96xbf16>
    %31 = vector.shape_cast %30 : vector<1x8x96xbf16> to vector<8x96xbf16>
    %32 = vector.shape_cast %29 : vector<8x96xbf16> to vector<1x8x96xbf16>
    tpu.vector_store %arg6[%c0_13, %c0_14, %c0_15], %32 {strides = array<i32>} : memref<1x8x96xbf16, #tpu.memory_space<vmem>>, vector<1x8x96xbf16>,
    return
  }
  func.func @transform_0(%arg0: i32, %arg1: i32) -> (i32, i32, i32) {
    %c0_i32 = arith.constant 0 : i32
    %c0_i32_0 = arith.constant 0 : i32
    return %arg0, %arg1, %c0_i32 : i32, i32, i32
  }
  func.func @transform_1(%arg0: i32, %arg1: i32) -> (i32, i32) {
    %c0_i32 = arith.constant 0 : i32
    %c0_i32_0 = arith.constant 0 : i32
    %c0_i32_1 = arith.constant 0 : i32
    return %c0_i32, %c0_i32_0 : i32, i32
  }
  func.func @transform_2(%arg0: i32, %arg1: i32) -> (i32, i32) {
    %c0_i32 = arith.constant 0 : i32
    %c0_i32_0 = arith.constant 0 : i32
    %c0_i32_1 = arith.constant 0 : i32
    return %c0_i32, %c0_i32_0 : i32, i32
  }
  func.func @transform_3(%arg0: i32, %arg1: i32) -> (i32, i32) {
    %c0_i32 = arith.constant 0 : i32
    %c0_i32_0 = arith.constant 0 : i32
    %c0_i32_1 = arith.constant 0 : i32
    return %c0_i32, %c0_i32_0 : i32, i32
  }
  func.func @transform_4(%arg0: i32, %arg1: i32) -> (i32, i32, i32) {
    %c0_i32 = arith.constant 0 : i32
    %c0_i32_0 = arith.constant 0 : i32
    return %arg0, %arg1, %c0_i32 : i32, i32, i32
  }
}

</mosaic_0001>

<llo_original>
// kernel: tpu_custom_call.1
$region0: #{tpu_custom_call.1}
  #allocation0 [shape = 'u32[]', space=smem, size = 0x4, offset = 0x4, fixed_abs, tag = 'smem constant byte address 0x4 - core index']
  #allocation1 [shape = 'u32[144,128]{1,0:T(1,128)}', space=vmem, size = 0x12000, scoped, tag = 'internal scratch']
  %s0 = inlined_call_operand.hbm [shape: f32[2,8,32], index: 0, kind: input, shape index: {}]
  %s1 = inlined_call_operand.vmem [shape: f32[1,32], index: 1, kind: input, shape index: {}]
  %s2 = inlined_call_operand.vmem [shape: f32[1,32], index: 2, kind: input, shape index: {}]
  %s3 = inlined_call_operand.hbm [shape: bf16[32,96], index: 3, kind: input, shape index: {}]
  %s4 = inlined_call_operand.hbm [shape: bf16[2,8,96], index: 4, kind: output, shape index: {}]
  %s5 = sld [smem:[#allocation0]]
  $region57: #{tpu_custom_call.1} parent=0
    _
  %s7 = ssub.s32 1, %s5
  %s8 = scalar_select 0, %s7, %s5
  $region1: #{tpu_custom_call.1} parent=0
    #allocation2 [shape = 'u8[8192]{0}', space=vmem, size = 0x2000, scoped, tag = 'input window, operand 0']
    #allocation3 [shape = 's32[2]{0}', space=sflag, size = 0x8, scoped, tag = 'scoped memory for tpu_custom_call.1']
    #allocation4 [shape = 's32[2]{0}', space=sflag, size = 0x8, scoped, tag = 'scoped memory for tpu_custom_call.1']
    #allocation5 [shape = 'u8[8192]{0}', space=vmem, size = 0x2000, scoped, tag = 'input window, operand 3, single buffered']
    #allocation6 [shape = 's32[1]{0}', space=sflag, size = 0x4, scoped, tag = 'scoped memory for tpu_custom_call.1']
    #allocation7 [shape = 'u8[4096]{0}', space=vmem, size = 0x1000, scoped, tag = 'output window, operand 0']
    %9 = vsyncpa [#allocation3], 0
    %s10 = scalar_lea.sflag [#allocation3], 1
    %11 = vsyncpa %s10, 0
    %12 = vsyncpa [#allocation6], 0
    %13 = vsyncpa [#allocation4], 0
    %s14 = scalar_lea.sflag [#allocation4], 1
    %15 = vsyncpa %s14, 0
    loop: start=0, step=1, limit=4
    $region2: #{tpu_custom_call.1} parent=1 // loop_pre_header
      _
    $region3: #{tpu_custom_call.1} parent=1 // loop_header
      %s17 = sphi 0, %s21
      %p18 = scmp.ge.s32.totalorder %s17, 4
      %s24 = sphi 0, %s36
      %s25 = sphi 0, %s32
      %s26 = sphi 0, %s24
      %s27 = sphi 0, %s25
      %s28 = sphi 0, %s26
      %s29 = sphi 0, %s27
      %s41 = sphi 0, %s43
      %s44 = sphi 0, %s41
      %s45 = sphi 0, %s44
      %s61 = sphi 0, %s45
      %s65 = sphi 0, %s65
      %s67 = sphi 0, %s65
      %s68 = sphi 0, %s67
      %s82 = sphi 0, %s68
      %s86 = sphi 0, %s86
      %s88 = sphi 0, %s86
      %s89 = sphi 0, %s88
      %s103 = sphi 0, %s89
      %s107 = sphi 0, %s107
      %s109 = sphi 0, %s107
      %s110 = sphi 0, %s109
      %s124 = sphi 0, %s110
      %s132 = sphi 0, %s134
      %s135 = sphi 0, %s132
      %s136 = sphi 0, %s135
      %s152 = sphi 0, %s136
    $region4: #{tpu_custom_call.1} parent=1 // loop_header_branch
      %20 = sbr.rel (%p18) target = $region8
    $region5: #{tpu_custom_call.1} parent=1 // loop_body
      %s22 = ssub.s32 %s17, 1
      %s23 = ssub.s32 %s17, 2
      %s30 = sadd.s32 1, %s25
      %p31 = scmp.ge.s32.totalorder %s30, 1
      %s32 = scalar_select %p31, 0, %s30
      %s33 = sadd.s32 1, %s24
      %s34 = scalar_select %p31, %s33, %s24
      %p35 = scmp.ge.s32.totalorder %s34, 2
      %s36 = scalar_select %p35, 0, %s34
      %s37 = ssub.s32 %s24, %s36
      %s38 = ssub.s32 %s25, %s32
      %s39 = sor.u32 %s37, %s38
      %p40 = scmp.eq.s32.totalorder %s39, 0
      %s42 = sadd.s32 %s41, 1
      %s43 = scalar_select %p40, %s41, %s42
      %p46 = pneg %p40
      %p47 = scmp.eq.s32.totalorder %s17, 1
      %p48 = por %p46, %p47
      %p49 = scmp.ne.s32.totalorder %s41, %s44
      %p50 = scmp.eq.s32.totalorder %s17, 0
      %p51 = por %p49, %p50
      %p52 = scmp.ne.s32.totalorder %s41, %s44
      %p53 = scmp.eq.s32.totalorder %s22, 1
      %p54 = por %p52, %p53
      %p55 = scmp.ne.s32.totalorder %s44, %s45
      %p56 = scmp.eq.s32.totalorder %s22, 0
      %p57 = por %p55, %p56
      %p58 = scmp.ne.s32.totalorder %s44, %s45
      %p59 = scmp.eq.s32.totalorder %s23, 1
      %p60 = por %p58, %p59
      %p62 = scmp.ne.s32.totalorder %s45, %s61
      %p63 = scmp.eq.s32.totalorder %s23, 0
      %p64 = por %p62, %p63
      %s66 = sadd.s32 %s65, 1
      %p69 = scmp.eq.s32.totalorder %s17, 1
      %p70 = scmp.ne.s32.totalorder %s65, %s67
      %p71 = scmp.eq.s32.totalorder %s17, 0
      %p72 = por %p70, %p71
      %p73 = scmp.ne.s32.totalorder %s65, %s67
      %p74 = scmp.eq.s32.totalorder %s22, 1
      %p75 = por %p73, %p74
      %p76 = scmp.ne.s32.totalorder %s67, %s68
      %p77 = scmp.eq.s32.totalorder %s22, 0
      %p78 = por %p76, %p77
      %p79 = scmp.ne.s32.totalorder %s67, %s68
      %p80 = scmp.eq.s32.totalorder %s23, 1
      %p81 = por %p79, %p80
      %p83 = scmp.ne.s32.totalorder %s68, %s82
      %p84 = scmp.eq.s32.totalorder %s23, 0
      %p85 = por %p83, %p84
      %s87 = sadd.s32 %s86, 1
      %p90 = scmp.eq.s32.totalorder %s17, 1
      %p91 = scmp.ne.s32.totalorder %s86, %s88
      %p92 = scmp.eq.s32.totalorder %s17, 0
      %p93 = por %p91, %p92
      %p94 = scmp.ne.s32.totalorder %s86, %s88
      %p95 = scmp.eq.s32.totalorder %s22, 1
      %p96 = por %p94, %p95
      %p97 = scmp.ne.s32.totalorder %s88, %s89
      %p98 = scmp.eq.s32.totalorder %s22, 0
      %p99 = por %p97, %p98
      %p100 = scmp.ne.s32.totalorder %s88, %s89
      %p101 = scmp.eq.s32.totalorder %s23, 1
      %p102 = por %p100, %p101
      %p104 = scmp.ne.s32.totalorder %s89, %s103
      %p105 = scmp.eq.s32.totalorder %s23, 0
      %p106 = por %p104, %p105
      %s108 = sadd.s32 %s107, 1
      %p111 = scmp.eq.s32.totalorder %s17, 1
      %p112 = scmp.ne.s32.totalorder %s107, %s109
      %p113 = scmp.eq.s32.totalorder %s17, 0
      %p114 = por %p112, %p113
      %p115 = scmp.ne.s32.totalorder %s107, %s109
      %p116 = scmp.eq.s32.totalorder %s22, 1
      %p117 = por %p115, %p116
      %p118 = scmp.ne.s32.totalorder %s109, %s110
      %p119 = scmp.eq.s32.totalorder %s22, 0
      %p120 = por %p118, %p119
      %p121 = scmp.ne.s32.totalorder %s109, %s110
      %p122 = scmp.eq.s32.totalorder %s23, 1
      %p123 = por %p121, %p122
      %p125 = scmp.ne.s32.totalorder %s110, %s124
      %p126 = scmp.eq.s32.totalorder %s23, 0
      %p127 = por %p125, %p126
      %s128 = ssub.s32 %s24, %s36
      %s129 = ssub.s32 %s25, %s32
      %s130 = sor.u32 %s128, %s129
      %p131 = scmp.eq.s32.totalorder %s130, 0
      %s133 = sadd.s32 %s132, 1
      %s134 = scalar_select %p131, %s132, %s133
      %p137 = pneg %p131
      %p138 = scmp.eq.s32.totalorder %s17, 1
      %p139 = por %p137, %p138
      %p140 = scmp.ne.s32.totalorder %s132, %s135
      %p141 = scmp.eq.s32.totalorder %s17, 0
      %p142 = por %p140, %p141
      %p143 = scmp.ne.s32.totalorder %s132, %s135
      %p144 = scmp.eq.s32.totalorder %s22, 1
      %p145 = por %p143, %p144
      %p146 = scmp.ne.s32.totalorder %s135, %s136
      %p147 = scmp.eq.s32.totalorder %s22, 0
      %p148 = por %p146, %p147
      %p149 = scmp.ne.s32.totalorder %s135, %s136
      %p150 = scmp.eq.s32.totalorder %s23, 1
      %p151 = por %p149, %p150
      %p153 = scmp.ne.s32.totalorder %s136, %s152
      %p154 = scmp.eq.s32.totalorder %s23, 0
      %p155 = por %p153, %p154
      %p156 = scmp.le.s32.totalorder 1, %s17
      %p157 = scmp.lt.s32.totalorder %s17, 3
      %p158 = pnand %p156, %p157
      %p159 = pneg %p158
      // Predicated region
      $region9: #{tpu_custom_call.1} parent=5 // pred_check
        _
      $region10: #{tpu_custom_call.1} parent=5 // pred_check_branch
        %161 = sbr.rel (%p158) target = $region12
      $region11: #{tpu_custom_call.1} parent=5 // pred_region
        %s162 = ssub.s32 %s17, 1
        // Predicated region
        $region13: #{tpu_custom_call.1} parent=11 // pred_check
          %p163 = pneg %p78
        $region14: #{tpu_custom_call.1} parent=11 // pred_check_branch
          %165 = sbr.rel (%p163) target = $region16
        $region15: #{tpu_custom_call.1} parent=11 // pred_region
          _
        $region16: #{tpu_custom_call.1} parent=11 // pred_fallthru
          _
        // Predicated region
        $region17: #{tpu_custom_call.1} parent=11 // pred_check
          %p166 = pneg %p99
        $region18: #{tpu_custom_call.1} parent=11 // pred_check_branch
          %168 = sbr.rel (%p166) target = $region20
        $region19: #{tpu_custom_call.1} parent=11 // pred_region
          _
        $region20: #{tpu_custom_call.1} parent=11 // pred_fallthru
          _
        // Predicated region
        $region21: #{tpu_custom_call.1} parent=11 // pred_check
          %p169 = pneg %p120
        $region22: #{tpu_custom_call.1} parent=11 // pred_check_branch
          %171 = sbr.rel (%p169) target = $region24
        $region23: #{tpu_custom_call.1} parent=11 // pred_region
          %s173 = ssub.s32 256, 256
          %174 = vsyncadd [#allocation6], %s173
          %s175 = sshll.u32 [#allocation5], 4
          %s176 = int_to_ptr.vmem [resolvable:$true] %s175
          %181 = dma.hbm_to_vmem [thread:$0]  %s3, 256, %s176, [#allocation6], 64, 64, 4
        $region24: #{tpu_custom_call.1} parent=11 // pred_fallthru
          _
      $region12: #{tpu_custom_call.1} parent=5 // pred_fallthru
        _
      %p182 = scmp.lt.s32.totalorder %s17, 2
      // Predicated region
      $region25: #{tpu_custom_call.1} parent=5 // pred_check
        %p183 = pneg %p182
      $region26: #{tpu_custom_call.1} parent=5 // pred_check_branch
        %185 = sbr.rel (%p183) target = $region28
      $region27: #{tpu_custom_call.1} parent=5 // pred_region
        // Predicated region
        $region29: #{tpu_custom_call.1} parent=27 // pred_check
          %p186 = pneg %p51
        $region30: #{tpu_custom_call.1} parent=27 // pred_check_branch
          %188 = sbr.rel (%p186) target = $region32
        $region31: #{tpu_custom_call.1} parent=27 // pred_region
          %s189 = sand.u32 %s41, 1
          %s190 = scalar_lea.sflag [#allocation3], %s189
          %s191 = sand.u32 %s41, 1
          %s192 = smul.addr %s191, 8
          %s193 = scalar_lea.vmem [#allocation2], %s192
          %s195 = ssub.s32 128, 128
          %196 = vsyncadd %s190, %s195
          %s197 = sadd.s32 %s25, %s24
          %s198 = smul.addr %s197, 128
          %s199 = scalar_lea.hbm %s0, %s198
          %s201 = sshll.u32 %s193, 4
          %s202 = int_to_ptr.vmem [resolvable:$true] %s201
          %204 = dma.hbm_to_vmem [thread:$0]  %s199, 128, %s202, %s190
        $region32: #{tpu_custom_call.1} parent=27 // pred_fallthru
          _
      $region28: #{tpu_custom_call.1} parent=5 // pred_fallthru
        _
      %p205 = scmp.le.s32.totalorder 1, %s17
      %p206 = scmp.lt.s32.totalorder %s17, 3
      %p207 = pnand %p205, %p206
      %p208 = pneg %p207
      // Predicated region
      $region33: #{tpu_custom_call.1} parent=5 // pred_check
        _
      $region34: #{tpu_custom_call.1} parent=5 // pred_check_branch
        %210 = sbr.rel (%p207) target = $region36
      $region35: #{tpu_custom_call.1} parent=5 // pred_region
        %s211 = ssub.s32 %s17, 1
        %s212 = sand.u32 %s44, 1
        %s213 = scalar_lea.sflag [#allocation3], %s212
        %s214 = sand.u32 %s44, 1
        %s215 = smul.addr %s214, 8
        %s216 = scalar_lea.vmem [#allocation2], %s215
        // Predicated region
        $region37: #{tpu_custom_call.1} parent=35 // pred_check
          %p217 = pneg %p57
        $region38: #{tpu_custom_call.1} parent=35 // pred_check_branch
          %219 = sbr.rel (%p217) target = $region40
        $region39: #{tpu_custom_call.1} parent=35 // pred_region
          %220 = dma.done %s213, 128
        $region40: #{tpu_custom_call.1} parent=35 // pred_fallthru
          _
        // Predicated region
        $region41: #{tpu_custom_call.1} parent=35 // pred_check
          %p221 = pneg %p120
        $region42: #{tpu_custom_call.1} parent=35 // pred_check_branch
          %223 = sbr.rel (%p221) target = $region44
        $region43: #{tpu_custom_call.1} parent=35 // pred_region
          %224 = dma.done [#allocation6], 256
        $region44: #{tpu_custom_call.1} parent=35 // pred_fallthru
          _
        %s225 = sand.u32 %s44, 1
        %s226 = scalar_lea.sflag [#allocation3], %s225
        %s227 = sand.u32 %s44, 1
        %s228 = smul.addr %s227, 8
        %s229 = scalar_lea.vmem [#allocation2], %s228
        %p230 = pneg %p57
        %p231 = pneg %p54
        %p232 = pneg %p78
        %p233 = pneg %p75
        %p234 = pneg %p99
        %p235 = pneg %p96
        %p236 = pneg %p120
        %p237 = pneg %p117
        %p238 = pneg %p148
        %p239 = pneg %p145
        %s240 = sand.u32 %s135, 1
        %s241 = scalar_lea.sflag [#allocation4], %s240
        %s242 = sand.u32 %s135, 1
        %s243 = smul.addr %s242, 4
        %s244 = scalar_lea.vmem [#allocation7], %s243
        %v246 = vld [vmem:[%s216] sm:$0xff]
        %v247 = vld [vmem:[%s1] sm:$0x1]
        %v248 = vld [vmem:[%s2] sm:$0x1]
        %vm249 = vcmask 261120
        %v250 = vsel %vm249, %v246, 0.0
        %251 = vadd.xlane.f32.xlu0 %v250
        %v252 = vpop.xlane.xlu0 %251
        %v253 = vrcp.pop 32.0
        %v254 = vmul.f32 %v252, %v253
        %v255 = vsub.f32 %v246, %v254
        %v256 = vmul.f32 %v255, %v255
        %v257 = vsel %vm249, %v256, 0.0
        %258 = vadd.xlane.f32.xlu0 %v257
        %v259 = vpop.xlane.xlu0 %258
        %v260 = vmul.f32 %v259, %v253
        %v261 = vadd.f32 %v260, 1e-05
        %v262 = vrsqrt.pop %v261
        %v263 = vmul.f32 %v255, %v262
        %v265 = vlaneseq
        %v266 = vshrl.u32 %v265, 7
        %v267 = vsub.s32 0, %v266
        %v268 = vrot.slane %v247, %v267
        %v270 = vmul.f32 %v263, %v268
        %v272 = vlaneseq
        %v273 = vshrl.u32 %v272, 7
        %v274 = vsub.s32 0, %v273
        %v275 = vrot.slane %v248, %v274
        %v277 = vadd.f32 %v270, %v275
        %v278 = vpack.c.bf16 %v277, %v277
        %v279 = vld [vmem:[#allocation5] sm:$0xf]
        %v280 = vld [vmem:[#allocation5 + $0x4] sm:$0xf]
        %v281 = vld [vmem:[#allocation5 + $0x8] sm:$0xf]
        %v282 = vld [vmem:[#allocation5 + $0xc] sm:$0xf]
        %v287 = vunpack.c.l.b16 %v279
        %v288 = vunpack.c.l.b16 %v280
        %v289 = vunpack.c.l.b16 %v281
        %v290 = vunpack.c.l.b16 %v282
        %v291 = vpack.c.b16 %v288, %v287
        %v292 = vpack.c.b16 %v290, %v289
        %v296 = vsel %vm249, %v278, 0
        %298 = vmatprep.subr.bf16.mxu0 0
        %299 = vmatpush1.bf16.msra.mxu0 %v291
        %300 = vmatprep.subr.bf16.mxu0 0
        %301 = vmatpush1.bf16.msra.mxu0 %v292
        %302 = vmatprep.subr.bf16.mxu0 0
        %303 = vmatpush1.bf16.msra.mxu0 0
        %304 = vmatprep.subr.bf16.mxu0 0
        %305 = vmatpush1.bf16.msra.mxu0 0
        %306 = vmatprep.subr.bf16.mxu0 0
        %307 = vmatpush1.bf16.msra.mxu0 0
        %308 = vmatprep.subr.bf16.mxu0 0
        %309 = vmatpush1.bf16.msra.mxu0 0
        %310 = vmatprep.subr.bf16.mxu0 0
        %311 = vmatpush1.bf16.msra.mxu0 0
        %312 = vmatprep.subr.bf16.mxu0 0
        %313 = vmatpush1.bf16.msra.mxu0 0
        %314 = vmatprep.subr.bf16.mxu0 0
        %315 = vmatpush1.bf16.msra.mxu0 0
        %316 = vmatprep.subr.bf16.mxu0 0
        %317 = vmatpush1.bf16.msra.mxu0 0
        %318 = vmatprep.subr.bf16.mxu0 0
        %319 = vmatpush1.bf16.msra.mxu0 0
        %320 = vmatprep.subr.bf16.mxu0 0
        %321 = vmatpush1.bf16.msra.mxu0 0
        %322 = vmatprep.subr.bf16.mxu0 0
        %323 = vmatpush1.bf16.msra.mxu0 0
        %324 = vmatprep.subr.bf16.mxu0 0
        %325 = vmatpush1.bf16.msra.mxu0 0
        %326 = vmatprep.subr.bf16.mxu0 0
        %327 = vmatpush1.bf16.msra.mxu0 0
        %328 = vmatprep.subr.bf16.mxu0 0
        %329 = vmatpush1.bf16.msra.mxu0 0
        %330 = vmatprep.mubr.bf16.mxu0 0
        %331 = vmatmul.mubr.bf16.gmra.mrb[0].mxu0 %v296
        %v332 = vpop.f32.mrb[0].mxu0
        %v333 = vadd.f32 0.0, %v332
        %v334 = vpop.f32.mrb[0].mxu0
        %v335 = vpop.f32.mrb[0].mxu0
        %v336 = vpop.f32.mrb[0].mxu0
        %337 = vdwg.mxu0
        %v338 = vpack.c.bf16 %v333, %v333
        %vm339 = vcmask 781312
        %340 = vst.msk [vmem:[%s244] sm:$0xf] %vm339, %v338
        %s341 = sand.u32 %s135, 1
        %s342 = scalar_lea.sflag [#allocation4], %s341
        %s343 = sand.u32 %s135, 1
        %s344 = smul.addr %s343, 4
        %s345 = scalar_lea.vmem [#allocation7], %s344
        // Predicated region
        $region45: #{tpu_custom_call.1} parent=35 // pred_check
          %p346 = pneg %p145
        $region46: #{tpu_custom_call.1} parent=35 // pred_check_branch
          %348 = sbr.rel (%p346) target = $region48
        $region47: #{tpu_custom_call.1} parent=35 // pred_region
          %s350 = ssub.s32 64, 64
          %351 = vsyncadd %s342, %s350
          %s352 = sadd.s32 %s27, %s26
          %s353 = smul.addr %s352, 64
          %s354 = scalar_lea.hbm %s4, %s353
          %s356 = sshll.u32 %s345, 4
          %s357 = int_to_ptr.vmem [resolvable:$true] %s356
          %359 = dma.vmem_to_hbm [thread:$0]  %s357, 64, %s354, %s342
        $region48: #{tpu_custom_call.1} parent=35 // pred_fallthru
          _
      $region36: #{tpu_custom_call.1} parent=5 // pred_fallthru
        _
      %p360 = scmp.le.s32.totalorder 2, %s17
      // Predicated region
      $region49: #{tpu_custom_call.1} parent=5 // pred_check
        %p361 = pneg %p360
      $region50: #{tpu_custom_call.1} parent=5 // pred_check_branch
        %363 = sbr.rel (%p361) target = $region52
      $region51: #{tpu_custom_call.1} parent=5 // pred_region
        %s364 = ssub.s32 %s17, 2
        // Predicated region
        $region53: #{tpu_custom_call.1} parent=51 // pred_check
          %p365 = pneg %p151
        $region54: #{tpu_custom_call.1} parent=51 // pred_check_branch
          %367 = sbr.rel (%p365) target = $region56
        $region55: #{tpu_custom_call.1} parent=51 // pred_region
          %s368 = sand.u32 %s136, 1
          %s369 = scalar_lea.sflag [#allocation4], %s368
          %s370 = sand.u32 %s136, 1
          %s371 = smul.addr %s370, 4
          %s372 = scalar_lea.vmem [#allocation7], %s371
          %373 = dma.done %s369, 64
        $region56: #{tpu_custom_call.1} parent=51 // pred_fallthru
          _
      $region52: #{tpu_custom_call.1} parent=5 // pred_fallthru
        _
    $region6: #{tpu_custom_call.1} parent=1 // loop_footer
      %s21 = sadd.s32 1, %s17
    $region7: #{tpu_custom_call.1} parent=1 // loop_footer_branch
      %16 = sbr.rel target = $region3
    $region8: #{tpu_custom_call.1} parent=1 // loop_exit
      _
    %374 = vsyncpa [#allocation3], 1
    %s375 = scalar_lea.sflag [#allocation3], 1
    %376 = vsyncpa %s375, 1
    %377 = vsyncpa [#allocation6], 1
    %378 = vsyncpa [#allocation4], 1
    %s379 = scalar_lea.sflag [#allocation4], 1
    %380 = vsyncpa %s379, 1

// kernel: tpu_custom_call.1
$region0: #{tpu_custom_call.1}
  #allocation0 [shape = 'u32[]', space=smem, size = 0x4, offset = 0x4, fixed_abs, tag = 'smem constant byte address 0x4 - core index']
  #allocation1 [shape = 'u32[144,128]{1,0:T(1,128)}', space=vmem, size = 0x12000, scoped, tag = 'internal scratch']
  %s0 = inlined_call_operand.hbm [shape: f32[2,8,32], index: 0, kind: input, shape index: {}]
  %s1 = inlined_call_operand.vmem [shape: f32[1,32], index: 1, kind: input, shape index: {}]
  %s2 = inlined_call_operand.vmem [shape: f32[1,32], index: 2, kind: input, shape index: {}]
  %s3 = inlined_call_operand.hbm [shape: bf16[32,96], index: 3, kind: input, shape index: {}]
  %s4 = inlined_call_operand.hbm [shape: bf16[2,8,96], index: 4, kind: output, shape index: {}]
  %s5 = sld [smem:[#allocation0]]
  $region57: #{tpu_custom_call.1} parent=0
    _
  %s7 = ssub.s32 1, %s5
  %s8 = scalar_select 0, %s7, %s5
  $region1: #{tpu_custom_call.1} parent=0
    #allocation2 [shape = 'u8[8192]{0}', space=vmem, size = 0x2000, scoped, tag = 'input window, operand 0']
    #allocation3 [shape = 's32[2]{0}', space=sflag, size = 0x8, scoped, tag = 'scoped memory for tpu_custom_call.1']
    #allocation4 [shape = 's32[2]{0}', space=sflag, size = 0x8, scoped, tag = 'scoped memory for tpu_custom_call.1']
    #allocation5 [shape = 'u8[8192]{0}', space=vmem, size = 0x2000, scoped, tag = 'input window, operand 3, single buffered']
    #allocation6 [shape = 's32[1]{0}', space=sflag, size = 0x4, scoped, tag = 'scoped memory for tpu_custom_call.1']
    #allocation7 [shape = 'u8[4096]{0}', space=vmem, size = 0x1000, scoped, tag = 'output window, operand 0']
    %9 = vsyncpa [#allocation3], 0
    %s10 = scalar_lea.sflag [#allocation3], 1
    %11 = vsyncpa %s10, 0
    %12 = vsyncpa [#allocation6], 0
    %13 = vsyncpa [#allocation4], 0
    %s14 = scalar_lea.sflag [#allocation4], 1
    %15 = vsyncpa %s14, 0
    loop: start=0, step=1, limit=4
    $region2: #{tpu_custom_call.1} parent=1 // loop_pre_header
      _
    $region3: #{tpu_custom_call.1} parent=1 // loop_header
      %s17 = sphi 0, %s21
      %p18 = scmp.ge.s32.totalorder %s17, 4
      %s24 = sphi 0, %s36
      %s25 = sphi 0, %s32
      %s26 = sphi 0, %s24
      %s27 = sphi 0, %s25
      %s28 = sphi 0, %s26
      %s29 = sphi 0, %s27
      %s41 = sphi 0, %s43
      %s44 = sphi 0, %s41
      %s45 = sphi 0, %s44
      %s61 = sphi 0, %s45
      %s65 = sphi 0, %s65
      %s67 = sphi 0, %s65
      %s68 = sphi 0, %s67
      %s82 = sphi 0, %s68
      %s86 = sphi 0, %s86
      %s88 = sphi 0, %s86
      %s89 = sphi 0, %s88
      %s103 = sphi 0, %s89
      %s107 = sphi 0, %s107
      %s109 = sphi 0, %s107
      %s110 = sphi 0, %s109
      %s124 = sphi 0, %s110
      %s132 = sphi 0, %s134
      %s135 = sphi 0, %s132
      %s136 = sphi 0, %s135
      %s152 = sphi 0, %s136
    $region4: #{tpu_custom_call.1} parent=1 // loop_header_branch
      %20 = sbr.rel (%p18) target = $region8
    $region5: #{tpu_custom_call.1} parent=1 // loop_body
      %s22 = ssub.s32 %s17, 1
      %s23 = ssub.s32 %s17, 2
      %s30 = sadd.s32 1, %s25
      %p31 = scmp.ge.s32.totalorder %s30, 1
      %s32 = scalar_select %p31, 0, %s30
      %s33 = sadd.s32 1, %s24
      %s34 = scalar_select %p31, %s33, %s24
      %p35 = scmp.ge.s32.totalorder %s34, 2
      %s36 = scalar_select %p35, 0, %s34
      %s37 = ssub.s32 %s24, %s36
      %s38 = ssub.s32 %s25, %s32
      %s39 = sor.u32 %s37, %s38
      %p40 = scmp.eq.s32.totalorder %s39, 0
      %s42 = sadd.s32 %s41, 1
      %s43 = scalar_select %p40, %s41, %s42
      %p46 = pneg %p40
      %p47 = scmp.eq.s32.totalorder %s17, 1
      %p48 = por %p46, %p47
      %p49 = scmp.ne.s32.totalorder %s41, %s44
      %p50 = scmp.eq.s32.totalorder %s17, 0
      %p51 = por %p49, %p50
      %p52 = scmp.ne.s32.totalorder %s41, %s44
      %p53 = scmp.eq.s32.totalorder %s22, 1
      %p54 = por %p52, %p53
      %p55 = scmp.ne.s32.totalorder %s44, %s45
      %p56 = scmp.eq.s32.totalorder %s22, 0
      %p57 = por %p55, %p56
      %p58 = scmp.ne.s32.totalorder %s44, %s45
      %p59 = scmp.eq.s32.totalorder %s23, 1
      %p60 = por %p58, %p59
      %p62 = scmp.ne.s32.totalorder %s45, %s61
      %p63 = scmp.eq.s32.totalorder %s23, 0
      %p64 = por %p62, %p63
      %s66 = sadd.s32 %s65, 1
      %p69 = scmp.eq.s32.totalorder %s17, 1
      %p70 = scmp.ne.s32.totalorder %s65, %s67
      %p71 = scmp.eq.s32.totalorder %s17, 0
      %p72 = por %p70, %p71
      %p73 = scmp.ne.s32.totalorder %s65, %s67
      %p74 = scmp.eq.s32.totalorder %s22, 1
      %p75 = por %p73, %p74
      %p76 = scmp.ne.s32.totalorder %s67, %s68
      %p77 = scmp.eq.s32.totalorder %s22, 0
      %p78 = por %p76, %p77
      %p79 = scmp.ne.s32.totalorder %s67, %s68
      %p80 = scmp.eq.s32.totalorder %s23, 1
      %p81 = por %p79, %p80
      %p83 = scmp.ne.s32.totalorder %s68, %s82
      %p84 = scmp.eq.s32.totalorder %s23, 0
      %p85 = por %p83, %p84
      %s87 = sadd.s32 %s86, 1
      %p90 = scmp.eq.s32.totalorder %s17, 1
      %p91 = scmp.ne.s32.totalorder %s86, %s88
      %p92 = scmp.eq.s32.totalorder %s17, 0
      %p93 = por %p91, %p92
      %p94 = scmp.ne.s32.totalorder %s86, %s88
      %p95 = scmp.eq.s32.totalorder %s22, 1
      %p96 = por %p94, %p95
      %p97 = scmp.ne.s32.totalorder %s88, %s89
      %p98 = scmp.eq.s32.totalorder %s22, 0
      %p99 = por %p97, %p98
      %p100 = scmp.ne.s32.totalorder %s88, %s89
      %p101 = scmp.eq.s32.totalorder %s23, 1
      %p102 = por %p100, %p101
      %p104 = scmp.ne.s32.totalorder %s89, %s103
      %p105 = scmp.eq.s32.totalorder %s23, 0
      %p106 = por %p104, %p105
      %s108 = sadd.s32 %s107, 1
      %p111 = scmp.eq.s32.totalorder %s17, 1
      %p112 = scmp.ne.s32.totalorder %s107, %s109
      %p113 = scmp.eq.s32.totalorder %s17, 0
      %p114 = por %p112, %p113
      %p115 = scmp.ne.s32.totalorder %s107, %s109
      %p116 = scmp.eq.s32.totalorder %s22, 1
      %p117 = por %p115, %p116
      %p118 = scmp.ne.s32.totalorder %s109, %s110
      %p119 = scmp.eq.s32.totalorder %s22, 0
      %p120 = por %p118, %p119
      %p121 = scmp.ne.s32.totalorder %s109, %s110
      %p122 = scmp.eq.s32.totalorder %s23, 1
      %p123 = por %p121, %p122
      %p125 = scmp.ne.s32.totalorder %s110, %s124
      %p126 = scmp.eq.s32.totalorder %s23, 0
      %p127 = por %p125, %p126
      %s128 = ssub.s32 %s24, %s36
      %s129 = ssub.s32 %s25, %s32
      %s130 = sor.u32 %s128, %s129
      %p131 = scmp.eq.s32.totalorder %s130, 0
      %s133 = sadd.s32 %s132, 1
      %s134 = scalar_select %p131, %s132, %s133
      %p137 = pneg %p131
      %p138 = scmp.eq.s32.totalorder %s17, 1
      %p139 = por %p137, %p138
      %p140 = scmp.ne.s32.totalorder %s132, %s135
      %p141 = scmp.eq.s32.totalorder %s17, 0
      %p142 = por %p140, %p141
      %p143 = scmp.ne.s32.totalorder %s132, %s135
      %p144 = scmp.eq.s32.totalorder %s22, 1
      %p145 = por %p143, %p144
      %p146 = scmp.ne.s32.totalorder %s135, %s136
      %p147 = scmp.eq.s32.totalorder %s22, 0
      %p148 = por %p146, %p147
      %p149 = scmp.ne.s32.totalorder %s135, %s136
      %p150 = scmp.eq.s32.totalorder %s23, 1
      %p151 = por %p149, %p150
      %p153 = scmp.ne.s32.totalorder %s136, %s152
      %p154 = scmp.eq.s32.totalorder %s23, 0
      %p155 = por %p153, %p154
      %p156 = scmp.le.s32.totalorder 1, %s17
      %p157 = scmp.lt.s32.totalorder %s17, 3
      %p158 = pnand %p156, %p157
      %p159 = pneg %p158
      // Predicated region
      $region9: #{tpu_custom_call.1} parent=5 // pred_check
        _
      $region10: #{tpu_custom_call.1} parent=5 // pred_check_branch
        %161 = sbr.rel (%p158) target = $region12
      $region11: #{tpu_custom_call.1} parent=5 // pred_region
        %s162 = ssub.s32 %s17, 1
        // Predicated region
        $region13: #{tpu_custom_call.1} parent=11 // pred_check
          %p163 = pneg %p78
        $region14: #{tpu_custom_call.1} parent=11 // pred_check_branch
          %165 = sbr.rel (%p163) target = $region16
        $region15: #{tpu_custom_call.1} parent=11 // pred_region
          _
        $region16: #{tpu_custom_call.1} parent=11 // pred_fallthru
          _
        // Predicated region
        $region17: #{tpu_custom_call.1} parent=11 // pred_check
          %p166 = pneg %p99
        $region18: #{tpu_custom_call.1} parent=11 // pred_check_branch
          %168 = sbr.rel (%p166) target = $region20
        $region19: #{tpu_custom_call.1} parent=11 // pred_region
          _
        $region20: #{tpu_custom_call.1} parent=11 // pred_fallthru
          _
        // Predicated region
        $region21: #{tpu_custom_call.1} parent=11 // pred_check
          %p169 = pneg %p120
        $region22: #{tpu_custom_call.1} parent=11 // pred_check_branch
          %171 = sbr.rel (%p169) target = $region24
        $region23: #{tpu_custom_call.1} parent=11 // pred_region
          %s173 = ssub.s32 256, 256
          %174 = vsyncadd [#allocation6], %s173
          %s175 = sshll.u32 [#allocation5], 4
          %s176 = int_to_ptr.vmem [resolvable:$true] %s175
          %181 = dma.hbm_to_vmem [thread:$0]  %s3, 256, %s176, [#allocation6], 64, 64, 4
        $region24: #{tpu_custom_call.1} parent=11 // pred_fallthru
          _
      $region12: #{tpu_custom_call.1} parent=5 // pred_fallthru
        _
      %p182 = scmp.lt.s32.totalorder %s17, 2
      // Predicated region
      $region25: #{tpu_custom_call.1} parent=5 // pred_check
        %p183 = pneg %p182
      $region26: #{tpu_custom_call.1} parent=5 // pred_check_branch
        %185 = sbr.rel (%p183) target = $region28
      $region27: #{tpu_custom_call.1} parent=5 // pred_region
        // Predicated region
        $region29: #{tpu_custom_call.1} parent=27 // pred_check
          %p186 = pneg %p51
        $region30: #{tpu_custom_call.1} parent=27 // pred_check_branch
          %188 = sbr.rel (%p186) target = $region32
        $region31: #{tpu_custom_call.1} parent=27 // pred_region
          %s189 = sand.u32 %s41, 1
          %s190 = scalar_lea.sflag [#allocation3], %s189
          %s191 = sand.u32 %s41, 1
          %s192 = smul.addr %s191, 8
          %s193 = scalar_lea.vmem [#allocation2], %s192
          %s195 = ssub.s32 128, 128
          %196 = vsyncadd %s190, %s195
          %s197 = sadd.s32 %s25, %s24
          %s198 = smul.addr %s197, 128
          %s199 = scalar_lea.hbm %s0, %s198
          %s201 = sshll.u32 %s193, 4
          %s202 = int_to_ptr.vmem [resolvable:$true] %s201
          %204 = dma.hbm_to_vmem [thread:$0]  %s199, 128, %s202, %s190
        $region32: #{tpu_custom_call.1} parent=27 // pred_fallthru
          _
      $region28: #{tpu_custom_call.1} parent=5 // pred_fallthru
        _
      %p205 = scmp.le.s32.totalorder 1, %s17
      %p206 = scmp.lt.s32.totalorder %s17, 3
      %p207 = pnand %p205, %p206
      %p208 = pneg %p207
      // Predicated region
      $region33: #{tpu_custom_call.1} parent=5 // pred_check
        _
      $region34: #{tpu_custom_call.1} parent=5 // pred_check_branch
        %210 = sbr.rel (%p207) target = $region36
      $region35: #{tpu_custom_call.1} parent=5 // pred_region
        %s211 = ssub.s32 %s17, 1
        %s212 = sand.u32 %s44, 1
        %s213 = scalar_lea.sflag [#allocation3], %s212
        %s214 = sand.u32 %s44, 1
        %s215 = smul.addr %s214, 8
        %s216 = scalar_lea.vmem [#allocation2], %s215
        // Predicated region
        $region37: #{tpu_custom_call.1} parent=35 // pred_check
          %p217 = pneg %p57
        $region38: #{tpu_custom_call.1} parent=35 // pred_check_branch
          %219 = sbr.rel (%p217) target = $region40
        $region39: #{tpu_custom_call.1} parent=35 // pred_region
          %220 = dma.done %s213, 128
        $region40: #{tpu_custom_call.1} parent=35 // pred_fallthru
          _
        // Predicated region
        $region41: #{tpu_custom_call.1} parent=35 // pred_check
          %p221 = pneg %p120
        $region42: #{tpu_custom_call.1} parent=35 // pred_check_branch
          %223 = sbr.rel (%p221) target = $region44
        $region43: #{tpu_custom_call.1} parent=35 // pred_region
          %224 = dma.done [#allocation6], 256
        $region44: #{tpu_custom_call.1} parent=35 // pred_fallthru
          _
        %s225 = sand.u32 %s44, 1
        %s226 = scalar_lea.sflag [#allocation3], %s225
        %s227 = sand.u32 %s44, 1
        %s228 = smul.addr %s227, 8
        %s229 = scalar_lea.vmem [#allocation2], %s228
        %p230 = pneg %p57
        %p231 = pneg %p54
        %p232 = pneg %p78
        %p233 = pneg %p75
        %p234 = pneg %p99
        %p235 = pneg %p96
        %p236 = pneg %p120
        %p237 = pneg %p117
        %p238 = pneg %p148
        %p239 = pneg %p145
        %s240 = sand.u32 %s135, 1
        %s241 = scalar_lea.sflag [#allocation4], %s240
        %s242 = sand.u32 %s135, 1
        %s243 = smul.addr %s242, 4
        %s244 = scalar_lea.vmem [#allocation7], %s243
        %v246 = vld [vmem:[%s216] sm:$0xff]
        %v247 = vld [vmem:[%s1] sm:$0x1]
        %v248 = vld [vmem:[%s2] sm:$0x1]
        %vm249 = vcmask 261120
        %v250 = vsel %vm249, %v246, 0.0
        %251 = vadd.xlane.f32.xlu0 %v250
        %v252 = vpop.xlane.xlu0 %251
        %v253 = vrcp.pop 32.0
        %v254 = vmul.f32 %v252, %v253
        %v255 = vsub.f32 %v246, %v254
        %v256 = vmul.f32 %v255, %v255
        %v257 = vsel %vm249, %v256, 0.0
        %258 = vadd.xlane.f32.xlu0 %v257
        %v259 = vpop.xlane.xlu0 %258
        %v260 = vmul.f32 %v259, %v253
        %v261 = vadd.f32 %v260, 1e-05
        %v262 = vrsqrt.pop %v261
        %v263 = vmul.f32 %v255, %v262
        %v265 = vlaneseq
        %v266 = vshrl.u32 %v265, 7
        %v267 = vsub.s32 0, %v266
        %v268 = vrot.slane %v247, %v267
        %v270 = vmul.f32 %v263, %v268
        %v272 = vlaneseq
        %v273 = vshrl.u32 %v272, 7
        %v274 = vsub.s32 0, %v273
        %v275 = vrot.slane %v248, %v274
        %v277 = vadd.f32 %v270, %v275
        %v278 = vpack.c.bf16 %v277, %v277
        %v279 = vld [vmem:[#allocation5] sm:$0xf]
        %v280 = vld [vmem:[#allocation5 + $0x4] sm:$0xf]
        %v281 = vld [vmem:[#allocation5 + $0x8] sm:$0xf]
        %v282 = vld [vmem:[#allocation5 + $0xc] sm:$0xf]
        %v287 = vunpack.c.l.b16 %v279
        %v288 = vunpack.c.l.b16 %v280
        %v289 = vunpack.c.l.b16 %v281
        %v290 = vunpack.c.l.b16 %v282
        %v291 = vpack.c.b16 %v288, %v287
        %v292 = vpack.c.b16 %v290, %v289
        %v296 = vsel %vm249, %v278, 0
        %298 = vmatprep.subr.bf16.mxu0 0
        %299 = vmatpush1.bf16.msra.mxu0 %v291
        %300 = vmatprep.subr.bf16.mxu0 0
        %301 = vmatpush1.bf16.msra.mxu0 %v292
        %302 = vmatprep.subr.bf16.mxu0 0
        %303 = vmatpush1.bf16.msra.mxu0 0
        %304 = vmatprep.subr.bf16.mxu0 0
        %305 = vmatpush1.bf16.msra.mxu0 0
        %306 = vmatprep.subr.bf16.mxu0 0
        %307 = vmatpush1.bf16.msra.mxu0 0
        %308 = vmatprep.subr.bf16.mxu0 0
        %309 = vmatpush1.bf16.msra.mxu0 0
        %310 = vmatprep.subr.bf16.mxu0 0
        %311 = vmatpush1.bf16.msra.mxu0 0
        %312 = vmatprep.subr.bf16.mxu0 0
        %313 = vmatpush1.bf16.msra.mxu0 0
        %314 = vmatprep.subr.bf16.mxu0 0
        %315 = vmatpush1.bf16.msra.mxu0 0
        %316 = vmatprep.subr.bf16.mxu0 0
        %317 = vmatpush1.bf16.msra.mxu0 0
        %318 = vmatprep.subr.bf16.mxu0 0
        %319 = vmatpush1.bf16.msra.mxu0 0
        %320 = vmatprep.subr.bf16.mxu0 0
        %321 = vmatpush1.bf16.msra.mxu0 0
        %322 = vmatprep.subr.bf16.mxu0 0
        %323 = vmatpush1.bf16.msra.mxu0 0
        %324 = vmatprep.subr.bf16.mxu0 0
        %325 = vmatpush1.bf16.msra.mxu0 0
        %326 = vmatprep.subr.bf16.mxu0 0
        %327 = vmatpush1.bf16.msra.mxu0 0
        %328 = vmatprep.subr.bf16.mxu0 0
        %329 = vmatpush1.bf16.msra.mxu0 0
        %330 = vmatprep.mubr.bf16.mxu0 0
        %331 = vmatmul.mubr.bf16.gmra.mrb[0].mxu0 %v296
        %v332 = vpop.f32.mrb[0].mxu0
        %v333 = vadd.f32 0.0, %v332
        %v334 = vpop.f32.mrb[0].mxu0
        %v335 = vpop.f32.mrb[0].mxu0
        %v336 = vpop.f32.mrb[0].mxu0
        %337 = vdwg.mxu0
        %v338 = vpack.c.bf16 %v333, %v333
        %vm339 = vcmask 781312
        %340 = vst.msk [vmem:[%s244] sm:$0xf] %vm339, %v338
        %s341 = sand.u32 %s135, 1
        %s342 = scalar_lea.sflag [#allocation4], %s341
        %s343 = sand.u32 %s135, 1
        %s344 = smul.addr %s343, 4
        %s345 = scalar_lea.vmem [#allocation7], %s344
        // Predicated region
        $region45: #{tpu_custom_call.1} parent=35 // pred_check
          %p346 = pneg %p145
        $region46: #{tpu_custom_call.1} parent=35 // pred_check_branch
          %348 = sbr.rel (%p346) target = $region48
        $region47: #{tpu_custom_call.1} parent=35 // pred_region
          %s350 = ssub.s32 64, 64
          %351 = vsyncadd %s342, %s350
          %s352 = sadd.s32 %s27, %s26
          %s353 = smul.addr %s352, 64
          %s354 = scalar_lea.hbm %s4, %s353
          %s356 = sshll.u32 %s345, 4
          %s357 = int_to_ptr.vmem [resolvable:$true] %s356
          %359 = dma.vmem_to_hbm [thread:$0]  %s357, 64, %s354, %s342
        $region48: #{tpu_custom_call.1} parent=35 // pred_fallthru
          _
      $region36: #{tpu_custom_call.1} parent=5 // pred_fallthru
        _
      %p360 = scmp.le.s32.totalorder 2, %s17
      // Predicated region
      $region49: #{tpu_custom_call.1} parent=5 // pred_check
        %p361 = pneg %p360
      $region50: #{tpu_custom_call.1} parent=5 // pred_check_branch
        %363 = sbr.rel (%p361) target = $region52
      $region51: #{tpu_custom_call.1} parent=5 // pred_region
        %s364 = ssub.s32 %s17, 2
        // Predicated region
        $region53: #{tpu_custom_call.1} parent=51 // pred_check
          %p365 = pneg %p151
        $region54: #{tpu_custom_call.1} parent=51 // pred_check_branch
          %367 = sbr.rel (%p365) target = $region56
        $region55: #{tpu_custom_call.1} parent=51 // pred_region
          %s368 = sand.u32 %s136, 1
          %s369 = scalar_lea.sflag [#allocation4], %s368
          %s370 = sand.u32 %s136, 1
          %s371 = smul.addr %s370, 4
          %s372 = scalar_lea.vmem [#allocation7], %s371
          %373 = dma.done %s369, 64
        $region56: #{tpu_custom_call.1} parent=51 // pred_fallthru
          _
      $region52: #{tpu_custom_call.1} parent=5 // pred_fallthru
        _
    $region6: #{tpu_custom_call.1} parent=1 // loop_footer
      %s21 = sadd.s32 1, %s17
    $region7: #{tpu_custom_call.1} parent=1 // loop_footer_branch
      %16 = sbr.rel target = $region3
    $region8: #{tpu_custom_call.1} parent=1 // loop_exit
      _
    %374 = vsyncpa [#allocation3], 1
    %s375 = scalar_lea.sflag [#allocation3], 1
    %376 = vsyncpa %s375, 1
    %377 = vsyncpa [#allocation6], 1
    %378 = vsyncpa [#allocation4], 1
    %s379 = scalar_lea.sflag [#allocation4], 1
    %380 = vsyncpa %s379, 1

</llo_original>
